<compile_context>
chip_gen: v7x
topology: tpu7x:2x2x1
jax: 0.10.0
libtpu: 0.0.40
codegen_flags: <defaults>
</compile_context>

<pallas_src>
import functools

import jax
import jax.numpy as jnp
from jax import lax
from jax.experimental import pallas as pl
from jax.experimental.pallas import tpu as pltpu

EPS = 1e-8   # parity with the reference; eps/eps == 1.0 so the masked branch
             # contributes exactly 0 to the (ratio - 1) running sum.
LANE = 128


def _round_up(x, m):
    return (x + m - 1) // m * m


def _round_down(x, m):
    return x // m * m


def _sam_loss_kernel(o_ref, l_ref, out_ref, acc_ref, *,
                     n_channels, tile_rows, acc_rows, rows, mask_tail):
    """Grid = (N, steps); input blocks are (1, C, tile_rows, 128), native NCHW."""
    t = pl.program_id(1)

    @pl.when(t == 0)
    def _():
        acc_ref[...] = jnp.zeros_like(acc_ref)

    # Unrolled reduction over the (in-block) channel axis.  Each o_ref[0, c] /
    # l_ref[0, c] is a lane/sublane-dense (tile_rows, 128) slab; upcast to f32
    # in-kernel so 16-bit inputs stream at native width.
    for c in range(n_channels):
        oc = o_ref[0, c].astype(jnp.float32)
        lc = l_ref[0, c].astype(jnp.float32)
        if c == 0:
            norm_o = oc * oc
            norm_l = lc * lc
            sp = oc * lc
        else:
            norm_o = norm_o + oc * oc
            norm_l = norm_l + lc * lc
            sp = sp + oc * lc

    prod = norm_o * norm_l
    # sqrt + divide fused into one EUP rsqrt.  Accumulate (ratio - 1):
    #   * zero-norm pixels (reference eps/eps == 1.0) contribute exactly 0,
    #   * lane-padding zeros contribute exactly 0,
    #   * masked tail rows (partial last block) contribute exactly 0.
    valid = prod > 0.0
    if mask_tail:
        rem = rows - t * tile_rows          # valid rows in this block
        row_ids = lax.broadcasted_iota(jnp.int32, (tile_rows, LANE), 0)
        valid = jnp.logical_and(valid, row_ids < rem)
    ratio_m1 = jnp.where(valid, sp * lax.rsqrt(prod) - 1.0, 0.0)

    # Fold the (tile_rows, 128) slab down to a compact (acc_rows, 128) partial
    # in registers (acc_rows divides tile_rows by construction), then a single
    # accumulator read-modify-write per grid step.
    part = ratio_m1[0:acc_rows]
    for r in range(acc_rows, tile_rows, acc_rows):
        part = part + ratio_m1[r:r + acc_rows]
    acc_ref[...] += part

    @pl.when(t == pl.num_programs(1) - 1)
    def _():
        out_ref[0] = acc_ref[...]


def sam_loss(outputs, labels, *, max_tile_rows=2048,
             input_vmem_budget=24 * 1024 * 1024):
    """outputs, labels: (N, C, H, W) -> scalar mean SAM loss.

    Inputs may be f32/bf16/f16 — feed the producer's native dtype (the kernel
    upcasts in-register); never pre-cast to f32 in the caller.  On v5e/v6e
    (128 MiB VMEM) `max_tile_rows=4096` is a small additional win.
    """
    assert outputs.shape == labels.shape
    N, C, H, W = outputs.shape
    hw = H * W
    pixels = N * hw

    # Native NCHW layout: merge (H, W) and split into lane-dense (rows, 128).
    # When H*W % 128 == 0 both reshapes are free bitcasts (no HBM pass);
    # otherwise only the ragged tail is padded to the next multiple of 128
    # (padded pixels contribute exactly 0 to the (ratio - 1) sum).
    hw_pad = _round_up(hw, LANE)
    o = outputs.reshape(N, C, hw)
    l = labels.reshape(N, C, hw)
    if hw_pad != hw:
        # TODO(synk): avoiding this fallback copy would need an in-kernel gather
        # of the ragged lane tail; not worth it for a <=127-pixel pad.
        o = jnp.pad(o, ((0, 0), (0, 0), (0, hw_pad - hw)))
        l = jnp.pad(l, ((0, 0), (0, 0), (0, hw_pad - hw)))
    rows = hw_pad // LANE
    o = o.reshape(N, C, rows, LANE)
    l = l.reshape(N, C, rows, LANE)

    # Tile sizing from a C- and dtype-aware VMEM budget: double-buffered inputs
    # cost 2 arrays * 2 buffers * C * 128 * itemsize bytes per row of 128 pixels.
    itemsize = jnp.dtype(outputs.dtype).itemsize
    bytes_per_row = 2 * 2 * C * LANE * itemsize
    budget_rows = max(8, input_vmem_budget // bytes_per_row)
    budget_rows = min(budget_rows, max_tile_rows)

    if rows <= 64:
        tile_rows = rows                       # single block == full rows dim
    else:
        tile_rows = max(64, min(_round_down(budget_rows, 64),
                                _round_down(rows, 64)))
    steps = pl.cdiv(rows, tile_rows)
    acc_rows = min(64, tile_rows)              # divides tile_rows by construction
    mask_tail = steps * tile_rows != rows      # last block partially valid

    kernel = functools.partial(
        _sam_loss_kernel, n_channels=C, tile_rows=tile_rows,
        acc_rows=acc_rows, rows=rows, mask_tail=mask_tail)

    partials = pl.pallas_call(
        kernel,
        out_shape=jax.ShapeDtypeStruct((N, acc_rows, LANE), jnp.float32),
        grid=(N, steps),
        in_specs=[
            pl.BlockSpec((1, C, tile_rows, LANE), lambda n, t: (n, 0, t, 0)),
            pl.BlockSpec((1, C, tile_rows, LANE), lambda n, t: (n, 0, t, 0)),
        ],
        out_specs=pl.BlockSpec((1, acc_rows, LANE), lambda n, t: (n, 0, 0)),
        scratch_shapes=[pltpu.VMEM((acc_rows, LANE), jnp.float32)],
        compiler_params=pltpu.CompilerParams(
            # Sample axis is independent ("parallel"); pixel-tile axis carries
            # the resident accumulator ("arbitrary").
            # TODO(synk): on v7x, pltpu.CORE_PARALLEL on the leading axis (or an
            # explicit per-core pl.core_map) would guarantee both TensorCores
            # stream pixels; plain "parallel" is the portable/safe choice.
            dimension_semantics=("parallel", "arbitrary"),
            vmem_limit_bytes=48 * 1024 * 1024,
        ),
    )(o, l)

    # partials holds sum(ratio - 1) over all valid pixels, so
    #   loss = 1 - mean(ratio) = -sum(ratio - 1) / P.
    total_m1 = jnp.sum(partials)
    return -total_m1 / jnp.float32(pixels)


def _sam_loss_ref(outputs, labels):
    # Pure-JAX reference mirroring the PyTorch forward.
    o = outputs.astype(jnp.float32)
    l = labels.astype(jnp.float32)
    norm_o = jnp.sum(o * o, axis=1)
    norm_l = jnp.sum(l * l, axis=1)
    sp = jnp.sum(o * l, axis=1)
    norm_p = jnp.sqrt(norm_o * norm_l)
    mask = norm_p == 0.0
    sp = jnp.where(mask, EPS, sp)
    norm_p = jnp.where(mask, EPS, norm_p)
    N = o.shape[0]
    sp = sp.reshape(N, -1)
    norm_p = norm_p.reshape(N, -1)
    angle = jnp.sum(sp / norm_p, axis=1) / norm_p.shape[1]
    return jnp.mean(1.0 - angle)


if __name__ == "__main__":
    def _check(shape, dtype, key):
        k1, k2 = jax.random.split(key)
        o = jax.random.normal(k1, shape, dtype=jnp.float32).astype(dtype)
        l = jax.random.normal(k2, shape, dtype=jnp.float32).astype(dtype)
        l = l.at[0, :, 0, 0].set(0.0)          # exercise the zero-norm / eps path
        got = jax.block_until_ready(sam_loss(o, l))
        want = jax.block_until_ready(_sam_loss_ref(o, l))
        assert jnp.allclose(got, want, rtol=1e-5, atol=1e-5), (shape, dtype, got, want)

    k0, k1, k2 = jax.random.split(jax.random.PRNGKey(0), 3)
    # Base case: H*W % 128 == 0 -> fully zero-copy wrapper, single step.
    _check((2, 4, 16, 16), jnp.float32, k0)
    # Multi-step streaming path with a masked partial tail block (rows=72, tile=64).
    _check((2, 4, 96, 96), jnp.float32, k1)
    # bf16 inputs (native-width streaming) + ragged lane tail (H*W=100) + odd C.
    _check((2, 3, 10, 10), jnp.bfloat16, k2)

    print("KERNEL_OK")
</pallas_src>

<mosaic_0001>
module attributes {stable_mosaic.version = 11 : i64} {
  func.func @_sam_loss_kernel(%arg0: i32, %arg1: i32, %arg2: memref<1x4x2x128xf32, #tpu.memory_space<vmem>>, %arg3: memref<1x4x2x128xf32, #tpu.memory_space<vmem>>, %arg4: memref<1x2x128xf32, #tpu.memory_space<vmem>>, %arg5: memref<2x128xf32, #tpu.memory_space<vmem>>) attributes {dimension_semantics = [#tpu.dimension_semantics<parallel>, #tpu.dimension_semantics<arbitrary>], iteration_bounds = array<i64: 2, 1>, scalar_prefetch = 0 : i64, scratch_operands = 1 : i64, tpu.core_type = #tpu.core_type<tc>, window_params = [{transform_indices = @transform_0, window_bounds = array<i64: 1, 4, 2, 128>}, {transform_indices = @transform_1, window_bounds = array<i64: 1, 4, 2, 128>}, {transform_indices = @transform_2, window_bounds = array<i64: 1, 2, 128>}]} {
    %c0_i32 = arith.constant 0 : i32
    %0 = arith.cmpi eq, %arg1, %c0_i32 : i32
    %1 = arith.extui %0 : i1 to i32
    %c0_i32_0 = arith.constant 0 : i32
    %2 = arith.cmpi ne, %1, %c0_i32_0 : i32
    scf.if %2 {
      %cst_37 = arith.constant 0.000000e+00 : f32
      %55 = vector.broadcast %cst_37 : f32 to vector<2x128xf32>
      %c0_38 = arith.constant 0 : index
      %c0_39 = arith.constant 0 : index
      %56 = vector.load %arg5[%c0_38, %c0_39] : memref<2x128xf32, #tpu.memory_space<vmem>>, vector<2x128xf32>
      tpu.vector_store %arg5[%c0_38, %c0_39], %55 {strides = array<i32>} : memref<2x128xf32, #tpu.memory_space<vmem>>, vector<2x128xf32>,
    } else {
    }
    %c0 = arith.constant 0 : index
    %c0_1 = arith.constant 0 : index
    %c0_2 = arith.constant 0 : index
    %c0_3 = arith.constant 0 : index
    %3 = vector.load %arg2[%c0, %c0_1, %c0_2, %c0_3] : memref<1x4x2x128xf32, #tpu.memory_space<vmem>>, vector<1x1x2x128xf32>
    %4 = vector.shape_cast %3 : vector<1x1x2x128xf32> to vector<2x128xf32>
    %c0_4 = arith.constant 0 : index
    %c0_5 = arith.constant 0 : index
    %c0_6 = arith.constant 0 : index
    %c0_7 = arith.constant 0 : index
    %5 = vector.load %arg3[%c0_4, %c0_5, %c0_6, %c0_7] : memref<1x4x2x128xf32, #tpu.memory_space<vmem>>, vector<1x1x2x128xf32>
    %6 = vector.shape_cast %5 : vector<1x1x2x128xf32> to vector<2x128xf32>
    %7 = arith.mulf %4, %4 : vector<2x128xf32>
    %8 = arith.mulf %6, %6 : vector<2x128xf32>
    %9 = arith.mulf %4, %6 : vector<2x128xf32>
    %c0_8 = arith.constant 0 : index
    %c1 = arith.constant 1 : index
    %c0_9 = arith.constant 0 : index
    %c0_10 = arith.constant 0 : index
    %10 = vector.load %arg2[%c0_8, %c1, %c0_9, %c0_10] : memref<1x4x2x128xf32, #tpu.memory_space<vmem>>, vector<1x1x2x128xf32>
    %11 = vector.shape_cast %10 : vector<1x1x2x128xf32> to vector<2x128xf32>
    %c0_11 = arith.constant 0 : index
    %c1_12 = arith.constant 1 : index
    %c0_13 = arith.constant 0 : index
    %c0_14 = arith.constant 0 : index
    %12 = vector.load %arg3[%c0_11, %c1_12, %c0_13, %c0_14] : memref<1x4x2x128xf32, #tpu.memory_space<vmem>>, vector<1x1x2x128xf32>
    %13 = vector.shape_cast %12 : vector<1x1x2x128xf32> to vector<2x128xf32>
    %14 = arith.mulf %11, %11 : vector<2x128xf32>
    %15 = arith.addf %7, %14 : vector<2x128xf32>
    %16 = arith.mulf %13, %13 : vector<2x128xf32>
    %17 = arith.addf %8, %16 : vector<2x128xf32>
    %18 = arith.mulf %11, %13 : vector<2x128xf32>
    %19 = arith.addf %9, %18 : vector<2x128xf32>
    %c0_15 = arith.constant 0 : index
    %c2 = arith.constant 2 : index
    %c0_16 = arith.constant 0 : index
    %c0_17 = arith.constant 0 : index
    %20 = vector.load %arg2[%c0_15, %c2, %c0_16, %c0_17] : memref<1x4x2x128xf32, #tpu.memory_space<vmem>>, vector<1x1x2x128xf32>
    %21 = vector.shape_cast %20 : vector<1x1x2x128xf32> to vector<2x128xf32>
    %c0_18 = arith.constant 0 : index
    %c2_19 = arith.constant 2 : index
    %c0_20 = arith.constant 0 : index
    %c0_21 = arith.constant 0 : index
    %22 = vector.load %arg3[%c0_18, %c2_19, %c0_20, %c0_21] : memref<1x4x2x128xf32, #tpu.memory_space<vmem>>, vector<1x1x2x128xf32>
    %23 = vector.shape_cast %22 : vector<1x1x2x128xf32> to vector<2x128xf32>
    %24 = arith.mulf %21, %21 : vector<2x128xf32>
    %25 = arith.addf %15, %24 : vector<2x128xf32>
    %26 = arith.mulf %23, %23 : vector<2x128xf32>
    %27 = arith.addf %17, %26 : vector<2x128xf32>
    %28 = arith.mulf %21, %23 : vector<2x128xf32>
    %29 = arith.addf %19, %28 : vector<2x128xf32>
    %c0_22 = arith.constant 0 : index
    %c3 = arith.constant 3 : index
    %c0_23 = arith.constant 0 : index
    %c0_24 = arith.constant 0 : index
    %30 = vector.load %arg2[%c0_22, %c3, %c0_23, %c0_24] : memref<1x4x2x128xf32, #tpu.memory_space<vmem>>, vector<1x1x2x128xf32>
    %31 = vector.shape_cast %30 : vector<1x1x2x128xf32> to vector<2x128xf32>
    %c0_25 = arith.constant 0 : index
    %c3_26 = arith.constant 3 : index
    %c0_27 = arith.constant 0 : index
    %c0_28 = arith.constant 0 : index
    %32 = vector.load %arg3[%c0_25, %c3_26, %c0_27, %c0_28] : memref<1x4x2x128xf32, #tpu.memory_space<vmem>>, vector<1x1x2x128xf32>
    %33 = vector.shape_cast %32 : vector<1x1x2x128xf32> to vector<2x128xf32>
    %34 = arith.mulf %31, %31 : vector<2x128xf32>
    %35 = arith.addf %25, %34 : vector<2x128xf32>
    %36 = arith.mulf %33, %33 : vector<2x128xf32>
    %37 = arith.addf %27, %36 : vector<2x128xf32>
    %38 = arith.mulf %31, %33 : vector<2x128xf32>
    %39 = arith.addf %29, %38 : vector<2x128xf32>
    %40 = arith.mulf %35, %37 : vector<2x128xf32>
    %cst = arith.constant 0.000000e+00 : f32
    %41 = vector.broadcast %cst : f32 to vector<2x128xf32>
    %42 = arith.cmpf ogt, %40, %41 : vector<2x128xf32>
    %43 = math.rsqrt %40 : vector<2x128xf32>
    %44 = arith.mulf %39, %43 : vector<2x128xf32>
    %cst_29 = arith.constant 1.000000e+00 : f32
    %45 = vector.broadcast %cst_29 : f32 to vector<2x128xf32>
    %46 = arith.subf %44, %45 : vector<2x128xf32>
    %cst_30 = arith.constant 0.000000e+00 : f32
    %47 = vector.broadcast %cst_30 : f32 to vector<2x128xf32>
    %48 = arith.select %42, %46, %47 : vector<2x128xi1>, vector<2x128xf32>
    %c0_31 = arith.constant 0 : index
    %c0_32 = arith.constant 0 : index
    %49 = vector.load %arg5[%c0_31, %c0_32] : memref<2x128xf32, #tpu.memory_space<vmem>>, vector<2x128xf32>
    %50 = arith.addf %49, %48 : vector<2x128xf32>
    %c0_33 = arith.constant 0 : index
    %c0_34 = arith.constant 0 : index
    %51 = vector.load %arg5[%c0_33, %c0_34] : memref<2x128xf32, #tpu.memory_space<vmem>>, vector<2x128xf32>
    tpu.vector_store %arg5[%c0_33, %c0_34], %50 {strides = array<i32>} : memref<2x128xf32, #tpu.memory_space<vmem>>, vector<2x128xf32>,
    %c0_i32_35 = arith.constant 0 : i32
    %52 = arith.cmpi eq, %arg1, %c0_i32_35 : i32
    %53 = arith.extui %52 : i1 to i32
    %c0_i32_36 = arith.constant 0 : i32
    %54 = arith.cmpi ne, %53, %c0_i32_36 : i32
    scf.if %54 {
      %c0_37 = arith.constant 0 : index
      %c0_38 = arith.constant 0 : index
      %55 = vector.load %arg5[%c0_37, %c0_38] : memref<2x128xf32, #tpu.memory_space<vmem>>, vector<2x128xf32>
      %c0_39 = arith.constant 0 : index
      %c0_40 = arith.constant 0 : index
      %c0_41 = arith.constant 0 : index
      %56 = vector.load %arg4[%c0_39, %c0_40, %c0_41] : memref<1x2x128xf32, #tpu.memory_space<vmem>>, vector<1x2x128xf32>
      %57 = vector.shape_cast %56 : vector<1x2x128xf32> to vector<2x128xf32>
      %58 = vector.shape_cast %55 : vector<2x128xf32> to vector<1x2x128xf32>
      tpu.vector_store %arg4[%c0_39, %c0_40, %c0_41], %58 {strides = array<i32>} : memref<1x2x128xf32, #tpu.memory_space<vmem>>, vector<1x2x128xf32>,
    } else {
    }
    return
  }
  func.func @transform_0(%arg0: i32, %arg1: i32) -> (i32, i32, i32, i32) {
    %c0_i32 = arith.constant 0 : i32
    %c0_i32_0 = arith.constant 0 : i32
    %c0_i32_1 = arith.constant 0 : i32
    return %arg0, %c0_i32, %arg1, %c0_i32_0 : i32, i32, i32, i32
  }
  func.func @transform_1(%arg0: i32, %arg1: i32) -> (i32, i32, i32, i32) {
    %c0_i32 = arith.constant 0 : i32
    %c0_i32_0 = arith.constant 0 : i32
    %c0_i32_1 = arith.constant 0 : i32
    return %arg0, %c0_i32, %arg1, %c0_i32_0 : i32, i32, i32, i32
  }
  func.func @transform_2(%arg0: i32, %arg1: i32) -> (i32, i32, i32) {
    %c0_i32 = arith.constant 0 : i32
    %c0_i32_0 = arith.constant 0 : i32
    %c0_i32_1 = arith.constant 0 : i32
    return %arg0, %c0_i32, %c0_i32_0 : i32, i32, i32
  }
}

</mosaic_0001>

<llo_original>
// kernel: tpu_custom_call.1
$region0: #{tpu_custom_call.1}
  #allocation0 [shape = 'u32[]', space=smem, size = 0x4, offset = 0x4, fixed_abs, tag = 'smem constant byte address 0x4 - core index']
  #allocation1 [shape = 'u32[144,128]{1,0:T(1,128)}', space=vmem, size = 0x12000, scoped, tag = 'internal scratch']
  #allocation2 [shape = 'f32[2,128]{1,0:T(2,128)}', space=vmem, size = 0x400, scoped, tag = 'scratch operand']
  %s0 = inlined_call_operand.hbm [shape: f32[2,4,2,128], index: 0, kind: input, shape index: {}]
  %s1 = inlined_call_operand.hbm [shape: f32[2,4,2,128], index: 1, kind: input, shape index: {}]
  %s2 = inlined_call_operand.hbm [shape: f32[2,2,128], index: 2, kind: output, shape index: {}]
  %s3 = sld [smem:[#allocation0]]
  $region57: #{tpu_custom_call.1} parent=0
    _
  %s5 = ssub.s32 1, %s3
  %s6 = scalar_select 0, %s5, %s3
  $region1: #{tpu_custom_call.1} parent=0
    #allocation3 [shape = 'u8[8192]{0}', space=vmem, size = 0x2000, scoped, tag = 'input window, operand 0']
    #allocation4 [shape = 's32[2]{0}', space=sflag, size = 0x8, scoped, tag = 'scoped memory for tpu_custom_call.1']
    #allocation5 [shape = 's32[2]{0}', space=sflag, size = 0x8, scoped, tag = 'scoped memory for tpu_custom_call.1']
    #allocation6 [shape = 'u8[8192]{0}', space=vmem, size = 0x2000, scoped, tag = 'input window, operand 1']
    #allocation7 [shape = 's32[2]{0}', space=sflag, size = 0x8, scoped, tag = 'scoped memory for tpu_custom_call.1']
    #allocation8 [shape = 'u8[2048]{0}', space=vmem, size = 0x800, scoped, tag = 'output window, operand 0']
    %7 = vsyncpa [#allocation4], 0
    %s8 = scalar_lea.sflag [#allocation4], 1
    %9 = vsyncpa %s8, 0
    %10 = vsyncpa [#allocation7], 0
    %s11 = scalar_lea.sflag [#allocation7], 1
    %12 = vsyncpa %s11, 0
    %13 = vsyncpa [#allocation5], 0
    %s14 = scalar_lea.sflag [#allocation5], 1
    %15 = vsyncpa %s14, 0
    loop: start=0, step=1, limit=4
    $region2: #{tpu_custom_call.1} parent=1 // loop_pre_header
      _
    $region3: #{tpu_custom_call.1} parent=1 // loop_header
      %s17 = sphi 0, %s21
      %p18 = scmp.ge.s32.totalorder %s17, 4
      %s24 = sphi 0, %s36
      %s25 = sphi 0, %s32
      %s26 = sphi 0, %s24
      %s27 = sphi 0, %s25
      %s28 = sphi 0, %s26
      %s29 = sphi 0, %s27
      %s41 = sphi 0, %s43
      %s44 = sphi 0, %s41
      %s45 = sphi 0, %s44
      %s61 = sphi 0, %s45
      %s69 = sphi 0, %s71
      %s72 = sphi 0, %s69
      %s73 = sphi 0, %s72
      %s89 = sphi 0, %s73
      %s95 = sphi 0, %s97
      %s98 = sphi 0, %s95
      %s99 = sphi 0, %s98
      %s115 = sphi 0, %s99
    $region4: #{tpu_custom_call.1} parent=1 // loop_header_branch
      %20 = sbr.rel (%p18) target = $region8
    $region5: #{tpu_custom_call.1} parent=1 // loop_body
      %s22 = ssub.s32 %s17, 1
      %s23 = ssub.s32 %s17, 2
      %s30 = sadd.s32 1, %s25
      %p31 = scmp.ge.s32.totalorder %s30, 1
      %s32 = scalar_select %p31, 0, %s30
      %s33 = sadd.s32 1, %s24
      %s34 = scalar_select %p31, %s33, %s24
      %p35 = scmp.ge.s32.totalorder %s34, 2
      %s36 = scalar_select %p35, 0, %s34
      %s37 = ssub.s32 %s24, %s36
      %s38 = ssub.s32 %s25, %s32
      %s39 = sor.u32 %s37, %s38
      %p40 = scmp.eq.s32.totalorder %s39, 0
      %s42 = sadd.s32 %s41, 1
      %s43 = scalar_select %p40, %s41, %s42
      %p46 = pneg %p40
      %p47 = scmp.eq.s32.totalorder %s17, 1
      %p48 = por %p46, %p47
      %p49 = scmp.ne.s32.totalorder %s41, %s44
      %p50 = scmp.eq.s32.totalorder %s17, 0
      %p51 = por %p49, %p50
      %p52 = scmp.ne.s32.totalorder %s41, %s44
      %p53 = scmp.eq.s32.totalorder %s22, 1
      %p54 = por %p52, %p53
      %p55 = scmp.ne.s32.totalorder %s44, %s45
      %p56 = scmp.eq.s32.totalorder %s22, 0
      %p57 = por %p55, %p56
      %p58 = scmp.ne.s32.totalorder %s44, %s45
      %p59 = scmp.eq.s32.totalorder %s23, 1
      %p60 = por %p58, %p59
      %p62 = scmp.ne.s32.totalorder %s45, %s61
      %p63 = scmp.eq.s32.totalorder %s23, 0
      %p64 = por %p62, %p63
      %s65 = ssub.s32 %s24, %s36
      %s66 = ssub.s32 %s25, %s32
      %s67 = sor.u32 %s65, %s66
      %p68 = scmp.eq.s32.totalorder %s67, 0
      %s70 = sadd.s32 %s69, 1
      %s71 = scalar_select %p68, %s69, %s70
      %p74 = pneg %p68
      %p75 = scmp.eq.s32.totalorder %s17, 1
      %p76 = por %p74, %p75
      %p77 = scmp.ne.s32.totalorder %s69, %s72
      %p78 = scmp.eq.s32.totalorder %s17, 0
      %p79 = por %p77, %p78
      %p80 = scmp.ne.s32.totalorder %s69, %s72
      %p81 = scmp.eq.s32.totalorder %s22, 1
      %p82 = por %p80, %p81
      %p83 = scmp.ne.s32.totalorder %s72, %s73
      %p84 = scmp.eq.s32.totalorder %s22, 0
      %p85 = por %p83, %p84
      %p86 = scmp.ne.s32.totalorder %s72, %s73
      %p87 = scmp.eq.s32.totalorder %s23, 1
      %p88 = por %p86, %p87
      %p90 = scmp.ne.s32.totalorder %s73, %s89
      %p91 = scmp.eq.s32.totalorder %s23, 0
      %p92 = por %p90, %p91
      %s93 = ssub.s32 %s24, %s36
      %p94 = scmp.eq.s32.totalorder %s93, 0
      %s96 = sadd.s32 %s95, 1
      %s97 = scalar_select %p94, %s95, %s96
      %p100 = pneg %p94
      %p101 = scmp.eq.s32.totalorder %s17, 1
      %p102 = por %p100, %p101
      %p103 = scmp.ne.s32.totalorder %s95, %s98
      %p104 = scmp.eq.s32.totalorder %s17, 0
      %p105 = por %p103, %p104
      %p106 = scmp.ne.s32.totalorder %s95, %s98
      %p107 = scmp.eq.s32.totalorder %s22, 1
      %p108 = por %p106, %p107
      %p109 = scmp.ne.s32.totalorder %s98, %s99
      %p110 = scmp.eq.s32.totalorder %s22, 0
      %p111 = por %p109, %p110
      %p112 = scmp.ne.s32.totalorder %s98, %s99
      %p113 = scmp.eq.s32.totalorder %s23, 1
      %p114 = por %p112, %p113
      %p116 = scmp.ne.s32.totalorder %s99, %s115
      %p117 = scmp.eq.s32.totalorder %s23, 0
      %p118 = por %p116, %p117
      %p119 = scmp.le.s32.totalorder 1, %s17
      %p120 = scmp.lt.s32.totalorder %s17, 3
      %p121 = pnand %p119, %p120
      %p122 = pneg %p121
      // Predicated region
      $region9: #{tpu_custom_call.1} parent=5 // pred_check
        _
      $region10: #{tpu_custom_call.1} parent=5 // pred_check_branch
        %124 = sbr.rel (%p121) target = $region12
      $region11: #{tpu_custom_call.1} parent=5 // pred_region
        %s125 = ssub.s32 %s17, 1
      $region12: #{tpu_custom_call.1} parent=5 // pred_fallthru
        _
      %p126 = scmp.lt.s32.totalorder %s17, 2
      // Predicated region
      $region13: #{tpu_custom_call.1} parent=5 // pred_check
        %p127 = pneg %p126
      $region14: #{tpu_custom_call.1} parent=5 // pred_check_branch
        %129 = sbr.rel (%p127) target = $region16
      $region15: #{tpu_custom_call.1} parent=5 // pred_region
        // Predicated region
        $region17: #{tpu_custom_call.1} parent=15 // pred_check
          %p130 = pneg %p51
        $region18: #{tpu_custom_call.1} parent=15 // pred_check_branch
          %132 = sbr.rel (%p130) target = $region20
        $region19: #{tpu_custom_call.1} parent=15 // pred_region
          %s133 = sand.u32 %s41, 1
          %s134 = scalar_lea.sflag [#allocation4], %s133
          %s135 = sand.u32 %s41, 1
          %s136 = smul.addr %s135, 8
          %s137 = scalar_lea.vmem [#allocation3], %s136
          %s139 = ssub.s32 128, 128
          %140 = vsyncadd %s134, %s139
          %s141 = smul.addr %s24, 4
          %s142 = sadd.s32 %s25, %s141
          %s143 = smul.addr %s142, 32
          %s144 = scalar_lea.hbm %s0, %s143
          %s145 = sshll.u32 %s137, 4
          %s146 = int_to_ptr.vmem [resolvable:$true] %s145
          %151 = dma.hbm_to_vmem [thread:$0]  %s144, 128, %s146, %s134, 32, 32, 2
        $region20: #{tpu_custom_call.1} parent=15 // pred_fallthru
          _
        // Predicated region
        $region21: #{tpu_custom_call.1} parent=15 // pred_check
          %p152 = pneg %p79
        $region22: #{tpu_custom_call.1} parent=15 // pred_check_branch
          %154 = sbr.rel (%p152) target = $region24
        $region23: #{tpu_custom_call.1} parent=15 // pred_region
          %s155 = sand.u32 %s69, 1
          %s156 = scalar_lea.sflag [#allocation7], %s155
          %s157 = sand.u32 %s69, 1
          %s158 = smul.addr %s157, 8
          %s159 = scalar_lea.vmem [#allocation6], %s158
          %s161 = ssub.s32 128, 128
          %162 = vsyncadd %s156, %s161
          %s163 = smul.addr %s24, 4
          %s164 = sadd.s32 %s25, %s163
          %s165 = smul.addr %s164, 32
          %s166 = scalar_lea.hbm %s1, %s165
          %s167 = sshll.u32 %s159, 4
          %s168 = int_to_ptr.vmem [resolvable:$true] %s167
          %173 = dma.hbm_to_vmem [thread:$0]  %s166, 128, %s168, %s156, 32, 32, 2
        $region24: #{tpu_custom_call.1} parent=15 // pred_fallthru
          _
      $region16: #{tpu_custom_call.1} parent=5 // pred_fallthru
        _
      %p174 = scmp.le.s32.totalorder 1, %s17
      %p175 = scmp.lt.s32.totalorder %s17, 3
      %p176 = pnand %p174, %p175
      %p177 = pneg %p176
      // Predicated region
      $region25: #{tpu_custom_call.1} parent=5 // pred_check
        _
      $region26: #{tpu_custom_call.1} parent=5 // pred_check_branch
        %179 = sbr.rel (%p176) target = $region28
      $region27: #{tpu_custom_call.1} parent=5 // pred_region
        %s180 = ssub.s32 %s17, 1
        %s181 = sand.u32 %s44, 1
        %s182 = scalar_lea.sflag [#allocation4], %s181
        %s183 = sand.u32 %s44, 1
        %s184 = smul.addr %s183, 8
        %s185 = scalar_lea.vmem [#allocation3], %s184
        // Predicated region
        $region29: #{tpu_custom_call.1} parent=27 // pred_check
          %p186 = pneg %p57
        $region30: #{tpu_custom_call.1} parent=27 // pred_check_branch
          %188 = sbr.rel (%p186) target = $region32
        $region31: #{tpu_custom_call.1} parent=27 // pred_region
          %189 = dma.done %s182, 128
        $region32: #{tpu_custom_call.1} parent=27 // pred_fallthru
          _
        %s190 = sand.u32 %s72, 1
        %s191 = scalar_lea.sflag [#allocation7], %s190
        %s192 = sand.u32 %s72, 1
        %s193 = smul.addr %s192, 8
        %s194 = scalar_lea.vmem [#allocation6], %s193
        // Predicated region
        $region33: #{tpu_custom_call.1} parent=27 // pred_check
          %p195 = pneg %p85
        $region34: #{tpu_custom_call.1} parent=27 // pred_check_branch
          %197 = sbr.rel (%p195) target = $region36
        $region35: #{tpu_custom_call.1} parent=27 // pred_region
          %198 = dma.done %s191, 128
        $region36: #{tpu_custom_call.1} parent=27 // pred_fallthru
          _
        %s199 = sand.u32 %s44, 1
        %s200 = scalar_lea.sflag [#allocation4], %s199
        %s201 = sand.u32 %s44, 1
        %s202 = smul.addr %s201, 8
        %s203 = scalar_lea.vmem [#allocation3], %s202
        %p204 = pneg %p57
        %p205 = pneg %p54
        %s206 = sand.u32 %s72, 1
        %s207 = scalar_lea.sflag [#allocation7], %s206
        %s208 = sand.u32 %s72, 1
        %s209 = smul.addr %s208, 8
        %s210 = scalar_lea.vmem [#allocation6], %s209
        %p211 = pneg %p85
        %p212 = pneg %p82
        %p213 = pneg %p111
        %p214 = pneg %p108
        %s215 = sand.u32 %s98, 1
        %s216 = scalar_lea.sflag [#allocation5], %s215
        %s217 = sand.u32 %s98, 1
        %s218 = smul.addr %s217, 2
        %s219 = scalar_lea.vmem [#allocation8], %s218
        %p220 = scmp.eq.s32.totalorder %s27, 0
        // Predicated region
        $region37: #{tpu_custom_call.1} parent=27 // pred_check
          %p221 = pneg %p220
        $region38: #{tpu_custom_call.1} parent=27 // pred_check_branch
          %223 = sbr.rel (%p221) target = $region40
        $region39: #{tpu_custom_call.1} parent=27 // pred_region
          %224 = vst [vmem:[#allocation2] sm:$0x3] 0.0
        $region40: #{tpu_custom_call.1} parent=27 // pred_fallthru
          _
        %v225 = vld [vmem:[%s185] sm:$0x3]
        %v226 = vld [vmem:[%s194] sm:$0x3]
        %v227 = vmul.f32 %v225, %v225
        %v228 = vmul.f32 %v226, %v226
        %v229 = vmul.f32 %v225, %v226
        %s230 = scalar_lea.vmem %s185, 2 [#allocation3]
        %v231 = vld [vmem:[%s230] sm:$0x3]
        %s232 = scalar_lea.vmem %s194, 2 [#allocation6]
        %v233 = vld [vmem:[%s232] sm:$0x3]
        %v234 = vmul.f32 %v231, %v231
        %v235 = vadd.f32 %v227, %v234
        %v236 = vmul.f32 %v233, %v233
        %v237 = vadd.f32 %v228, %v236
        %v238 = vmul.f32 %v231, %v233
        %v239 = vadd.f32 %v229, %v238
        %s240 = scalar_lea.vmem %s185, 4 [#allocation3]
        %v241 = vld [vmem:[%s240] sm:$0x3]
        %s242 = scalar_lea.vmem %s194, 4 [#allocation6]
        %v243 = vld [vmem:[%s242] sm:$0x3]
        %v244 = vmul.f32 %v241, %v241
        %v245 = vadd.f32 %v235, %v244
        %v246 = vmul.f32 %v243, %v243
        %v247 = vadd.f32 %v237, %v246
        %v248 = vmul.f32 %v241, %v243
        %v249 = vadd.f32 %v239, %v248
        %s250 = scalar_lea.vmem %s185, 6 [#allocation3]
        %v251 = vld [vmem:[%s250] sm:$0x3]
        %s252 = scalar_lea.vmem %s194, 6 [#allocation6]
        %v253 = vld [vmem:[%s252] sm:$0x3]
        %v254 = vmul.f32 %v251, %v251
        %v255 = vadd.f32 %v245, %v254
        %v256 = vmul.f32 %v253, %v253
        %v257 = vadd.f32 %v247, %v256
        %v258 = vmul.f32 %v251, %v253
        %v259 = vadd.f32 %v249, %v258
        %v260 = vmul.f32 %v255, %v257
        %vm261 = vcmp.gt.f32.partialorder %v260, 0.0
        %v262 = vrsqrt.pop %v260
        %v263 = vmul.f32 %v259, %v262
        %v264 = vsub.f32 %v263, 1.0
        %v265 = vsel %vm261, %v264, 0.0
        %v266 = vld [vmem:[#allocation2] sm:$0x3]
        %v267 = vadd.f32 %v266, %v265
        %268 = vst [vmem:[#allocation2] sm:$0x3] %v267
        // Predicated region
        $region41: #{tpu_custom_call.1} parent=27 // pred_check
          %p269 = pneg %p220
        $region42: #{tpu_custom_call.1} parent=27 // pred_check_branch
          %271 = sbr.rel (%p269) target = $region44
        $region43: #{tpu_custom_call.1} parent=27 // pred_region
          %v272 = vld [vmem:[#allocation2] sm:$0x3]
          %273 = vst [vmem:[%s219] sm:$0x3] %v272
        $region44: #{tpu_custom_call.1} parent=27 // pred_fallthru
          _
        %s274 = sand.u32 %s98, 1
        %s275 = scalar_lea.sflag [#allocation5], %s274
        %s276 = sand.u32 %s98, 1
        %s277 = smul.addr %s276, 2
        %s278 = scalar_lea.vmem [#allocation8], %s277
        // Predicated region
        $region45: #{tpu_custom_call.1} parent=27 // pred_check
          %p279 = pneg %p108
        $region46: #{tpu_custom_call.1} parent=27 // pred_check_branch
          %281 = sbr.rel (%p279) target = $region48
        $region47: #{tpu_custom_call.1} parent=27 // pred_region
          %s283 = ssub.s32 32, 32
          %284 = vsyncadd %s275, %s283
          %s285 = smul.addr %s26, 32
          %s286 = scalar_lea.hbm %s2, %s285
          %s288 = sshll.u32 %s278, 4
          %s289 = int_to_ptr.vmem [resolvable:$true] %s288
          %291 = dma.vmem_to_hbm [thread:$0]  %s289, 32, %s286, %s275
        $region48: #{tpu_custom_call.1} parent=27 // pred_fallthru
          _
      $region28: #{tpu_custom_call.1} parent=5 // pred_fallthru
        _
      %p292 = scmp.le.s32.totalorder 2, %s17
      // Predicated region
      $region49: #{tpu_custom_call.1} parent=5 // pred_check
        %p293 = pneg %p292
      $region50: #{tpu_custom_call.1} parent=5 // pred_check_branch
        %295 = sbr.rel (%p293) target = $region52
      $region51: #{tpu_custom_call.1} parent=5 // pred_region
        %s296 = ssub.s32 %s17, 2
        // Predicated region
        $region53: #{tpu_custom_call.1} parent=51 // pred_check
          %p297 = pneg %p114
        $region54: #{tpu_custom_call.1} parent=51 // pred_check_branch
          %299 = sbr.rel (%p297) target = $region56
        $region55: #{tpu_custom_call.1} parent=51 // pred_region
          %s300 = sand.u32 %s99, 1
          %s301 = scalar_lea.sflag [#allocation5], %s300
          %s302 = sand.u32 %s99, 1
          %s303 = smul.addr %s302, 2
          %s304 = scalar_lea.vmem [#allocation8], %s303
          %305 = dma.done %s301, 32
        $region56: #{tpu_custom_call.1} parent=51 // pred_fallthru
          _
      $region52: #{tpu_custom_call.1} parent=5 // pred_fallthru
        _
    $region6: #{tpu_custom_call.1} parent=1 // loop_footer
      %s21 = sadd.s32 1, %s17
    $region7: #{tpu_custom_call.1} parent=1 // loop_footer_branch
      %16 = sbr.rel target = $region3
    $region8: #{tpu_custom_call.1} parent=1 // loop_exit
      _
    %306 = vsyncpa [#allocation4], 1
    %s307 = scalar_lea.sflag [#allocation4], 1
    %308 = vsyncpa %s307, 1
    %309 = vsyncpa [#allocation7], 1
    %s310 = scalar_lea.sflag [#allocation7], 1
    %311 = vsyncpa %s310, 1
    %312 = vsyncpa [#allocation5], 1
    %s313 = scalar_lea.sflag [#allocation5], 1
    %314 = vsyncpa %s313, 1

</llo_original>
